<compile_context>
chip_gen: v7x
topology: tpu7x:2x2x1
jax: 0.10.0
libtpu: 0.0.40
codegen_flags: <defaults>
</compile_context>

<pallas_src>
import jax
import jax.numpy as jnp
from jax.experimental import pallas as pl
from jax.experimental.pallas import tpu as pltpu


def fusion2_kernel(w1_ref, y2_ref, o_ref):
    # w1_ref: (1, T) broadcast over rows; single vmul + cheap scale-by-2,
    # fully hidden under the HBM DMA of the Y2 / output tiles.
    o_ref[...] = (w1_ref[...] * y2_ref[...]) * 2.0


def _round_up(x, m):
    return ((x + m - 1) // m) * m


def fusion2(w1, y1, y2, *, target_block_bytes=2 << 20):
    """Fusion2 forward: 2 * W1 * Y2 (Y1 is unused, matching PyTorch).

    w1: (T,) float32; y1, y2: (..., T) float32 (e.g. (B, N, 1, T)).
    """
    del y1  # never read by the PyTorch forward -> never DMA'd.

    orig_shape = y2.shape
    T = orig_shape[-1]
    y2_2d = y2.reshape(-1, T)
    R = y2_2d.shape[0]
    w1_2d = w1.reshape(1, T)

    itemsize = jnp.dtype(y2.dtype).itemsize
    bytes_per_row = max(T * itemsize, 1)

    # --- Row tile sized by bytes (~target_block_bytes of Y2 per block),
    #     rounded to a multiple of 8 sublanes. ---
    tb = max(8, (target_block_bytes // bytes_per_row) // 8 * 8)

    # v7x has 2 TensorCores: if the problem is big enough to matter, make
    # sure the "parallel" grid axis has >= 2 steps so both cores stream.
    total_bytes = R * bytes_per_row
    if total_bytes >= (4 << 20):
        tb = min(tb, _round_up(pl.cdiv(R, 2), 8))

    if tb >= R:
        tb = R  # full-extent block (legal even if R % 8 != 0); grid = (1,)
    grid = (pl.cdiv(R, tb),)

    # --- Explicit VMEM budget: double-buffered Y2 in + out, plus tiny W1. ---
    block_bytes = tb * T * itemsize
    vmem_est = 4 * block_bytes + 2 * T * itemsize   # 2 bufs x (in + out) + W1
    vmem_limit = int(min(48 << 20, max(16 << 20, 2 * vmem_est)))

    out = pl.pallas_call(
        fusion2_kernel,
        out_shape=jax.ShapeDtypeStruct((R, T), y2.dtype),
        grid=grid,
        in_specs=[
            pl.BlockSpec((1, T), lambda i: (0, 0)),    # W1 (resident, tiny)
            pl.BlockSpec((tb, T), lambda i: (i, 0)),   # Y2 (pipelined)
        ],
        out_specs=pl.BlockSpec((tb, T), lambda i: (i, 0)),
        compiler_params=pltpu.CompilerParams(
            dimension_semantics=("parallel",),
            vmem_limit_bytes=vmem_limit),
    )(w1_2d, y2_2d)

    return out.reshape(orig_shape)


if __name__ == "__main__":
    key = jax.random.PRNGKey(0)
    k_w1, k_w2, k_y1, k_y2 = jax.random.split(key, 4)

    # Shapes consistent with ASTGCN_noWeekly's fusion stage: Yh/Yd have shape
    # (B, N, 1, Tp) after the Linear heads; Fusion2's parameters are (Tp,).
    # Tp=12 exercises the T % 128 != 0 masked-store path; R = B*N = 30 with a
    # tiny byte target exercises the partial last row-block path.
    B, N, Tp = 3, 10, 12

    # nn.init.uniform_ -> U[0, 1)
    W1 = jax.random.uniform(k_w1, (Tp,), dtype=jnp.float32)
    W2 = jax.random.uniform(k_w2, (Tp,), dtype=jnp.float32)  # unused in forward

    Y1 = jax.random.normal(k_y1, (B, N, 1, Tp), dtype=jnp.float32)  # unused
    Y2 = jax.random.normal(k_y2, (B, N, 1, Tp), dtype=jnp.float32)

    # Tiny byte target in the demo forces a multi-step pipelined grid
    # (tb=8 rows -> 4 grid steps, last block partial); production uses the
    # ~2 MiB default and gets byte-sized tiles automatically.
    out = fusion2(W1, Y1, Y2, target_block_bytes=512)
    jax.block_until_ready(out)

    # Reference (pure JAX, mirrors the PyTorch forward exactly).
    ref = W1 * Y2 + W1 * Y2
    assert out.shape == ref.shape
    assert jnp.allclose(out, ref, atol=1e-6, rtol=1e-6), "mismatch vs reference"

    print("KERNEL_OK")
</pallas_src>

<mosaic_0001>
module attributes {stable_mosaic.version = 11 : i64} {
  func.func @fusion2_kernel(%arg0: i32, %arg1: memref<1x12xf32, #tpu.memory_space<vmem>>, %arg2: memref<8x12xf32, #tpu.memory_space<vmem>>, %arg3: memref<8x12xf32, #tpu.memory_space<vmem>>) attributes {dimension_semantics = [#tpu.dimension_semantics<parallel>], iteration_bounds = array<i64: 4>, scalar_prefetch = 0 : i64, scratch_operands = 0 : i64, tpu.core_type = #tpu.core_type<tc>, window_params = [{pipeline_mode = #tpu.pipeline_mode<synchronous>, transform_indices = @transform_0, window_bounds = array<i64: 1, 12>}, {transform_indices = @transform_1, window_bounds = array<i64: 8, 12>}, {transform_indices = @transform_2, window_bounds = array<i64: 8, 12>}]} {
    %c0 = arith.constant 0 : index
    %c0_0 = arith.constant 0 : index
    %0 = vector.load %arg1[%c0, %c0_0] : memref<1x12xf32, #tpu.memory_space<vmem>>, vector<1x12xf32>
    %c0_1 = arith.constant 0 : index
    %c0_2 = arith.constant 0 : index
    %1 = vector.load %arg2[%c0_1, %c0_2] : memref<8x12xf32, #tpu.memory_space<vmem>>, vector<8x12xf32>
    %2 = vector.broadcast %0 : vector<1x12xf32> to vector<8x12xf32>
    %3 = arith.mulf %2, %1 : vector<8x12xf32>
    %cst = arith.constant 2.000000e+00 : f32
    %4 = vector.broadcast %cst : f32 to vector<8x12xf32>
    %5 = arith.mulf %3, %4 : vector<8x12xf32>
    %c0_3 = arith.constant 0 : index
    %c0_4 = arith.constant 0 : index
    %6 = vector.load %arg3[%c0_3, %c0_4] : memref<8x12xf32, #tpu.memory_space<vmem>>, vector<8x12xf32>
    tpu.vector_store %arg3[%c0_3, %c0_4], %5 {strides = array<i32>} : memref<8x12xf32, #tpu.memory_space<vmem>>, vector<8x12xf32>,
    return
  }
  func.func @transform_0(%arg0: i32) -> (i32, i32) {
    %c0_i32 = arith.constant 0 : i32
    %c0_i32_0 = arith.constant 0 : i32
    %c0_i32_1 = arith.constant 0 : i32
    return %c0_i32, %c0_i32_0 : i32, i32
  }
  func.func @transform_1(%arg0: i32) -> (i32, i32) {
    %c0_i32 = arith.constant 0 : i32
    %c0_i32_0 = arith.constant 0 : i32
    return %arg0, %c0_i32 : i32, i32
  }
  func.func @transform_2(%arg0: i32) -> (i32, i32) {
    %c0_i32 = arith.constant 0 : i32
    %c0_i32_0 = arith.constant 0 : i32
    return %arg0, %c0_i32 : i32, i32
  }
}

</mosaic_0001>

<llo_original>
// kernel: tpu_custom_call.1
$region0: #{tpu_custom_call.1}
  #allocation0 [shape = 'u32[]', space=smem, size = 0x4, offset = 0x4, fixed_abs, tag = 'smem constant byte address 0x4 - core index']
  #allocation1 [shape = 'u32[144,128]{1,0:T(1,128)}', space=vmem, size = 0x12000, scoped, tag = 'internal scratch']
  %s0 = inlined_call_operand.vmem [shape: f32[1,12], index: 0, kind: input, shape index: {}]
  %s1 = inlined_call_operand.vmem [shape: f32[30,12], index: 1, kind: input, shape index: {}]
  %s2 = inlined_call_operand.vmem [shape: f32[30,12], index: 2, kind: output, shape index: {}]
  %s3 = sld [smem:[#allocation0]]
  $region41: #{tpu_custom_call.1} parent=0
    _
  %s5 = ssub.s32 1, %s3
  %s6 = scalar_select 0, %s5, %s3
  loop: start=0, step=1, limit=6
  $region2: #{tpu_custom_call.1} parent=0 // loop_pre_header
    _
  $region3: #{tpu_custom_call.1} parent=0 // loop_header
    %s8 = sphi 0, %s12
    %p9 = scmp.ge.s32.totalorder %s8, 6
    %s16 = sphi 0, %s16
    %s18 = sphi 0, %s16
    %s19 = sphi 0, %s18
    %s33 = sphi 0, %s19
    %s39 = sphi 0, %s41
    %s42 = sphi 0, %s39
    %s43 = sphi 0, %s42
    %s59 = sphi 0, %s43
    %s65 = sphi 0, %s67
    %s68 = sphi 0, %s65
    %s69 = sphi 0, %s68
    %s85 = sphi 0, %s69
  $region4: #{tpu_custom_call.1} parent=0 // loop_header_branch
    %11 = sbr.rel (%p9) target = $region8
  $region5: #{tpu_custom_call.1} parent=0 // loop_body
    %s13 = ssub.s32 %s8, 1
    %s14 = ssub.s32 %s8, 2
    %s15 = sadd.s32 %s8, 1
    %s17 = sadd.s32 %s16, 1
    %p20 = scmp.eq.s32.totalorder %s8, 3
    %p21 = scmp.ne.s32.totalorder %s16, %s18
    %p22 = scmp.eq.s32.totalorder %s8, 0
    %p23 = por %p21, %p22
    %p24 = scmp.ne.s32.totalorder %s16, %s18
    %p25 = scmp.eq.s32.totalorder %s13, 3
    %p26 = por %p24, %p25
    %p27 = scmp.ne.s32.totalorder %s18, %s19
    %p28 = scmp.eq.s32.totalorder %s13, 0
    %p29 = por %p27, %p28
    %p30 = scmp.ne.s32.totalorder %s18, %s19
    %p31 = scmp.eq.s32.totalorder %s14, 3
    %p32 = por %p30, %p31
    %p34 = scmp.ne.s32.totalorder %s19, %s33
    %p35 = scmp.eq.s32.totalorder %s14, 0
    %p36 = por %p34, %p35
    %s37 = ssub.s32 %s8, %s15
    %p38 = scmp.eq.s32.totalorder %s37, 0
    %s40 = sadd.s32 %s39, 1
    %s41 = scalar_select %p38, %s39, %s40
    %p44 = pneg %p38
    %p45 = scmp.eq.s32.totalorder %s8, 3
    %p46 = por %p44, %p45
    %p47 = scmp.ne.s32.totalorder %s39, %s42
    %p48 = scmp.eq.s32.totalorder %s8, 0
    %p49 = por %p47, %p48
    %p50 = scmp.ne.s32.totalorder %s39, %s42
    %p51 = scmp.eq.s32.totalorder %s13, 3
    %p52 = por %p50, %p51
    %p53 = scmp.ne.s32.totalorder %s42, %s43
    %p54 = scmp.eq.s32.totalorder %s13, 0
    %p55 = por %p53, %p54
    %p56 = scmp.ne.s32.totalorder %s42, %s43
    %p57 = scmp.eq.s32.totalorder %s14, 3
    %p58 = por %p56, %p57
    %p60 = scmp.ne.s32.totalorder %s43, %s59
    %p61 = scmp.eq.s32.totalorder %s14, 0
    %p62 = por %p60, %p61
    %s63 = ssub.s32 %s8, %s15
    %p64 = scmp.eq.s32.totalorder %s63, 0
    %s66 = sadd.s32 %s65, 1
    %s67 = scalar_select %p64, %s65, %s66
    %p70 = pneg %p64
    %p71 = scmp.eq.s32.totalorder %s8, 3
    %p72 = por %p70, %p71
    %p73 = scmp.ne.s32.totalorder %s65, %s68
    %p74 = scmp.eq.s32.totalorder %s8, 0
    %p75 = por %p73, %p74
    %p76 = scmp.ne.s32.totalorder %s65, %s68
    %p77 = scmp.eq.s32.totalorder %s13, 3
    %p78 = por %p76, %p77
    %p79 = scmp.ne.s32.totalorder %s68, %s69
    %p80 = scmp.eq.s32.totalorder %s13, 0
    %p81 = por %p79, %p80
    %p82 = scmp.ne.s32.totalorder %s68, %s69
    %p83 = scmp.eq.s32.totalorder %s14, 3
    %p84 = por %p82, %p83
    %p86 = scmp.ne.s32.totalorder %s69, %s85
    %p87 = scmp.eq.s32.totalorder %s14, 0
    %p88 = por %p86, %p87
    %p89 = scmp.le.s32.totalorder 1, %s8
    %p90 = scmp.lt.s32.totalorder %s8, 5
    %p91 = pnand %p89, %p90
    %p92 = pneg %p91
    // Predicated region
    $region9: #{tpu_custom_call.1} parent=5 // pred_check
      _
    $region10: #{tpu_custom_call.1} parent=5 // pred_check_branch
      %94 = sbr.rel (%p91) target = $region12
    $region11: #{tpu_custom_call.1} parent=5 // pred_region
      %s95 = ssub.s32 %s8, 1
      // Predicated region
      $region13: #{tpu_custom_call.1} parent=11 // pred_check
        %p96 = pneg %p29
      $region14: #{tpu_custom_call.1} parent=11 // pred_check_branch
        %98 = sbr.rel (%p96) target = $region16
      $region15: #{tpu_custom_call.1} parent=11 // pred_region
        _
      $region16: #{tpu_custom_call.1} parent=11 // pred_fallthru
        _
    $region12: #{tpu_custom_call.1} parent=5 // pred_fallthru
      _
    %p99 = scmp.lt.s32.totalorder %s8, 4
    // Predicated region
    $region17: #{tpu_custom_call.1} parent=5 // pred_check
      %p100 = pneg %p99
    $region18: #{tpu_custom_call.1} parent=5 // pred_check_branch
      %102 = sbr.rel (%p100) target = $region20
    $region19: #{tpu_custom_call.1} parent=5 // pred_region
      // Predicated region
      $region21: #{tpu_custom_call.1} parent=19 // pred_check
        %p103 = pneg %p49
      $region22: #{tpu_custom_call.1} parent=19 // pred_check_branch
        %105 = sbr.rel (%p103) target = $region24
      $region23: #{tpu_custom_call.1} parent=19 // pred_region
        %p106 = scmp.lt.s32.totalorder %s8, 3
        %s107 = scalar_select %p106, %s8, 3
        %s108 = smul.addr %s107, 8
        %s109 = scalar_lea.vmem %s1, %s108
      $region24: #{tpu_custom_call.1} parent=19 // pred_fallthru
        _
    $region20: #{tpu_custom_call.1} parent=5 // pred_fallthru
      _
    %p110 = scmp.le.s32.totalorder 1, %s8
    %p111 = scmp.lt.s32.totalorder %s8, 5
    %p112 = pnand %p110, %p111
    %p113 = pneg %p112
    // Predicated region
    $region25: #{tpu_custom_call.1} parent=5 // pred_check
      _
    $region26: #{tpu_custom_call.1} parent=5 // pred_check_branch
      %115 = sbr.rel (%p112) target = $region28
    $region27: #{tpu_custom_call.1} parent=5 // pred_region
      %s116 = ssub.s32 %s8, 1
      %p117 = pneg %p29
      %p118 = pneg %p26
      %p119 = scmp.lt.s32.totalorder %s13, 3
      %s120 = scalar_select %p119, %s13, 3
      %s121 = smul.addr %s120, 8
      %s122 = scalar_lea.vmem %s1, %s121
      %p123 = pneg %p55
      %p124 = pneg %p52
      %p125 = pneg %p81
      %p126 = pneg %p78
      %p127 = scmp.lt.s32.totalorder %s13, 3
      %s128 = scalar_select %p127, %s13, 3
      %s129 = smul.addr %s128, 8
      %s130 = scalar_lea.vmem %s2, %s129
      %p131 = scmp.lt.s32.totalorder %s13, 3
      %s132 = scalar_select %p131, %s13, 3
      %s133 = smul.addr %s132, 8
      %s134 = scalar_lea.vmem %s1, %s133
      %p135 = scmp.lt.s32.totalorder %s13, 3
      %s136 = scalar_select %p135, %s13, 3
      %s137 = smul.addr %s136, 8
      %s138 = scalar_lea.vmem %s2, %s137
      %v139 = vld [vmem:[%s0] sm:$0x1]
      %v140 = vld [vmem:[%s134] sm:$0xff]
      %v142 = vlaneseq
      %v143 = vshrl.u32 %v142, 7
      %v144 = vsub.s32 0, %v143
      %v145 = vrot.slane %v139, %v144
      %v147 = vmul.f32 %v145, %v140
      %v148 = vmul.f32 %v147, 2.0
      %vm149 = vcmask 97280
      %150 = vst.msk [vmem:[%s138] sm:$0xff] %vm149, %v148
      %p151 = scmp.lt.s32.totalorder %s13, 3
      %s152 = scalar_select %p151, %s13, 3
      %s153 = smul.addr %s152, 8
      %s154 = scalar_lea.vmem %s2, %s153
      // Predicated region
      $region29: #{tpu_custom_call.1} parent=27 // pred_check
        %p155 = pneg %p78
      $region30: #{tpu_custom_call.1} parent=27 // pred_check_branch
        %157 = sbr.rel (%p155) target = $region32
      $region31: #{tpu_custom_call.1} parent=27 // pred_region
        _
      $region32: #{tpu_custom_call.1} parent=27 // pred_fallthru
        _
    $region28: #{tpu_custom_call.1} parent=5 // pred_fallthru
      _
    %p158 = scmp.le.s32.totalorder 2, %s8
    // Predicated region
    $region33: #{tpu_custom_call.1} parent=5 // pred_check
      %p159 = pneg %p158
    $region34: #{tpu_custom_call.1} parent=5 // pred_check_branch
      %161 = sbr.rel (%p159) target = $region36
    $region35: #{tpu_custom_call.1} parent=5 // pred_region
      %s162 = ssub.s32 %s8, 2
      // Predicated region
      $region37: #{tpu_custom_call.1} parent=35 // pred_check
        %p163 = pneg %p84
      $region38: #{tpu_custom_call.1} parent=35 // pred_check_branch
        %165 = sbr.rel (%p163) target = $region40
      $region39: #{tpu_custom_call.1} parent=35 // pred_region
        %p166 = scmp.lt.s32.totalorder %s14, 3
        %s167 = scalar_select %p166, %s14, 3
        %s168 = smul.addr %s167, 8
        %s169 = scalar_lea.vmem %s2, %s168
      $region40: #{tpu_custom_call.1} parent=35 // pred_fallthru
        _
    $region36: #{tpu_custom_call.1} parent=5 // pred_fallthru
      _
  $region6: #{tpu_custom_call.1} parent=0 // loop_footer
    %s12 = sadd.s32 1, %s8
  $region7: #{tpu_custom_call.1} parent=0 // loop_footer_branch
    %7 = sbr.rel target = $region3
  $region8: #{tpu_custom_call.1} parent=0 // loop_exit
    _

</llo_original>
